<compile_context>
chip_gen: v7x
topology: tpu7x:2x2x1
jax: 0.10.0
libtpu: 0.0.40
codegen_flags: <defaults>
</compile_context>

<pallas_src>
import math
import jax
import jax.numpy as jnp
from jax.experimental import pallas as pl
from jax.experimental.pallas import tpu as pltpu


def _attention_kernel(x_ref, wqkv_ref, bqkv_ref, o_ref):
    # x_ref:    (S, H)    one batch element (batch handled by the grid).
    # wqkv_ref: (3, H, H) stacked [Wq * 1/sqrt(H), Wk, Wv], (in, out) layout.
    # bqkv_ref: (3, 1, H) stacked [bq * 1/sqrt(H), bk, bv].
    # o_ref:    (S, H)
    x = x_ref[...]

    # Leading-axis slices of the stacked params are free (no lane-offset slicing).
    q = jnp.dot(x, wqkv_ref[0], preferred_element_type=jnp.float32) + bqkv_ref[0]
    k = jnp.dot(x, wqkv_ref[1], preferred_element_type=jnp.float32) + bqkv_ref[1]
    v = jnp.dot(x, wqkv_ref[2], preferred_element_type=jnp.float32) + bqkv_ref[2]

    # scores = Q @ K^T as a minor-dim contraction — no explicit transpose of K.
    scores = jax.lax.dot_general(
        q, k,
        dimension_numbers=(((1,), (1,)), ((), ())),
        preferred_element_type=jnp.float32,
    )  # (S, S); 1/sqrt(H) already folded into the Q projection.

    # Numerically-stable softmax over keys (exact divide; nothing is EUP-bound here).
    m = jnp.max(scores, axis=-1, keepdims=True)
    e = jnp.exp(scores - m)
    attn = e / jnp.sum(e, axis=-1, keepdims=True)

    out = jnp.dot(attn, v, preferred_element_type=jnp.float32)
    o_ref[...] = out.astype(o_ref.dtype)


def prepare_attention_params(wq, wk, wv, bq, bk, bv):
    """ONE-TIME parameter prep (not on the per-call path).

    Stacks Q/K/V into (3, H, H) / (3, 1, H) and folds the 1/sqrt(H) score
    scale into the Q projection (exact: scale*(xW+b) == x(scale*W)+scale*b).
    """
    H = wq.shape[0]
    scale = 1.0 / math.sqrt(H)
    wqkv = jnp.stack([wq * scale, wk, wv], axis=0)                    # (3, H, H)
    bqkv = jnp.stack([bq * scale, bk, bv], axis=0).reshape(3, 1, H)   # (3, 1, H)
    return wqkv, bqkv


@jax.jit
def attention_forward(x, wqkv, bqkv):
    """x: (B, S, H) f32. wqkv/bqkv: outputs of prepare_attention_params."""
    B, S, H = x.shape
    return pl.pallas_call(
        _attention_kernel,
        out_shape=jax.ShapeDtypeStruct((B, S, H), x.dtype),
        grid_spec=pltpu.PrefetchScalarGridSpec(
            num_scalar_prefetch=0,
            grid=(B,),  # one batch element per step; "parallel" => sharded on v7x's 2 TCs
            in_specs=[
                pl.BlockSpec((None, S, H), lambda b: (b, 0, 0)),  # x[b] -> kernel sees (S, H)
                pl.BlockSpec((3, H, H), lambda b: (0, 0, 0)),     # stacked Wqkv (resident)
                pl.BlockSpec((3, 1, H), lambda b: (0, 0, 0)),     # stacked bqkv (resident)
            ],
            out_specs=pl.BlockSpec((None, S, H), lambda b: (b, 0, 0)),
        ),
        compiler_params=pltpu.CompilerParams(
            dimension_semantics=("parallel",),
        ),
    )(x, wqkv, bqkv)


def _reference(x, wq, wk, wv, bq, bk, bv):
    H = x.shape[-1]
    hp = jax.lax.Precision.HIGHEST  # accurate f32 reference (avoid default bf16 dots)
    q = jnp.einsum("bsh,hd->bsd", x, wq, precision=hp) + bq
    k = jnp.einsum("bsh,hd->bsd", x, wk, precision=hp) + bk
    v = jnp.einsum("bsh,hd->bsd", x, wv, precision=hp) + bv
    scores = jnp.einsum("bsh,bth->bst", q, k, precision=hp) / math.sqrt(H)
    attn = jax.nn.softmax(scores, axis=-1)
    return jnp.einsum("bst,bth->bsh", attn, v, precision=hp)


if __name__ == "__main__":
    # Small shapes consistent with the module: batch=2, seq=8, hidden=32.
    B, S, H = 2, 8, 32

    key = jax.random.PRNGKey(0)
    kx, kq, kk, kv, kbq, kbk, kbv = jax.random.split(key, 7)

    x = jax.random.normal(kx, (B, S, H), dtype=jnp.float32)

    # Deterministic parameter init (torch Linear default: U(-1/sqrt(H), 1/sqrt(H))).
    bound = 1.0 / math.sqrt(H)
    wq = jax.random.uniform(kq, (H, H), jnp.float32, -bound, bound)   # pre-transposed (in, out)
    wk = jax.random.uniform(kk, (H, H), jnp.float32, -bound, bound)
    wv = jax.random.uniform(kv, (H, H), jnp.float32, -bound, bound)
    bq = jax.random.uniform(kbq, (H,), jnp.float32, -bound, bound)
    bk = jax.random.uniform(kbk, (H,), jnp.float32, -bound, bound)
    bv = jax.random.uniform(kbv, (H,), jnp.float32, -bound, bound)

    # One-time parameter fusion (off the per-call path), then the jitted forward.
    wqkv, bqkv = prepare_attention_params(wq, wk, wv, bq, bk, bv)
    wqkv, bqkv = jax.block_until_ready((wqkv, bqkv))

    out = attention_forward(x, wqkv, bqkv)
    out = jax.block_until_ready(out)

    ref = _reference(x, wq, wk, wv, bq, bk, bv)
    assert out.shape == (B, S, H)
    assert jnp.allclose(out, ref, atol=1e-5, rtol=1e-5), "mismatch vs reference"

    print("KERNEL_OK")
</pallas_src>

<mosaic_0001>
module attributes {stable_mosaic.version = 11 : i64} {
  func.func @_attention_kernel(%arg0: i32, %arg1: memref<1x8x32xf32, #tpu.memory_space<vmem>>, %arg2: memref<3x32x32xf32, #tpu.memory_space<vmem>>, %arg3: memref<3x1x32xf32, #tpu.memory_space<vmem>>, %arg4: memref<1x8x32xf32, #tpu.memory_space<vmem>>) attributes {dimension_semantics = [#tpu.dimension_semantics<parallel>], iteration_bounds = array<i64: 2>, scalar_prefetch = 0 : i64, scratch_operands = 0 : i64, tpu.core_type = #tpu.core_type<tc>, window_params = [{transform_indices = @transform_0, window_bounds = array<i64: 1, 8, 32>}, {pipeline_mode = #tpu.pipeline_mode<synchronous>, transform_indices = @transform_1, window_bounds = array<i64: 3, 32, 32>}, {pipeline_mode = #tpu.pipeline_mode<synchronous>, transform_indices = @transform_2, window_bounds = array<i64: 3, 1, 32>}, {transform_indices = @transform_3, window_bounds = array<i64: 1, 8, 32>}]} {
    %c0 = arith.constant 0 : index
    %c0_0 = arith.constant 0 : index
    %c0_1 = arith.constant 0 : index
    %0 = vector.load %arg1[%c0, %c0_0, %c0_1] : memref<1x8x32xf32, #tpu.memory_space<vmem>>, vector<1x8x32xf32>
    %1 = vector.shape_cast %0 : vector<1x8x32xf32> to vector<8x32xf32>
    %c0_2 = arith.constant 0 : index
    %c0_3 = arith.constant 0 : index
    %c0_4 = arith.constant 0 : index
    %2 = vector.load %arg2[%c0_2, %c0_3, %c0_4] : memref<3x32x32xf32, #tpu.memory_space<vmem>>, vector<1x32x32xf32>
    %3 = vector.shape_cast %2 : vector<1x32x32xf32> to vector<32x32xf32>
    %cst = arith.constant dense<0.000000e+00> : vector<8x32xf32>
    %4 = tpu.matmul %1, %3, %cst {dimension_numbers = #tpu.dot_dimension_numbers<[1], [0], [0], [1], [0, 0, 1, 1], [], []>} : vector<8x32xf32>, vector<32x32xf32>, vector<8x32xf32> -> vector<8x32xf32>
    %c0_5 = arith.constant 0 : index
    %c0_6 = arith.constant 0 : index
    %c0_7 = arith.constant 0 : index
    %5 = vector.load %arg3[%c0_5, %c0_6, %c0_7] : memref<3x1x32xf32, #tpu.memory_space<vmem>>, vector<1x1x32xf32>
    %6 = vector.shape_cast %5 : vector<1x1x32xf32> to vector<1x32xf32>
    %7 = vector.broadcast %6 : vector<1x32xf32> to vector<8x32xf32>
    %8 = arith.addf %4, %7 : vector<8x32xf32>
    %c1 = arith.constant 1 : index
    %c0_8 = arith.constant 0 : index
    %c0_9 = arith.constant 0 : index
    %9 = vector.load %arg2[%c1, %c0_8, %c0_9] : memref<3x32x32xf32, #tpu.memory_space<vmem>>, vector<1x32x32xf32>
    %10 = vector.shape_cast %9 : vector<1x32x32xf32> to vector<32x32xf32>
    %cst_10 = arith.constant dense<0.000000e+00> : vector<8x32xf32>
    %11 = tpu.matmul %1, %10, %cst_10 {dimension_numbers = #tpu.dot_dimension_numbers<[1], [0], [0], [1], [0, 0, 1, 1], [], []>} : vector<8x32xf32>, vector<32x32xf32>, vector<8x32xf32> -> vector<8x32xf32>
    %c1_11 = arith.constant 1 : index
    %c0_12 = arith.constant 0 : index
    %c0_13 = arith.constant 0 : index
    %12 = vector.load %arg3[%c1_11, %c0_12, %c0_13] : memref<3x1x32xf32, #tpu.memory_space<vmem>>, vector<1x1x32xf32>
    %13 = vector.shape_cast %12 : vector<1x1x32xf32> to vector<1x32xf32>
    %14 = vector.broadcast %13 : vector<1x32xf32> to vector<8x32xf32>
    %15 = arith.addf %11, %14 : vector<8x32xf32>
    %c2 = arith.constant 2 : index
    %c0_14 = arith.constant 0 : index
    %c0_15 = arith.constant 0 : index
    %16 = vector.load %arg2[%c2, %c0_14, %c0_15] : memref<3x32x32xf32, #tpu.memory_space<vmem>>, vector<1x32x32xf32>
    %17 = vector.shape_cast %16 : vector<1x32x32xf32> to vector<32x32xf32>
    %cst_16 = arith.constant dense<0.000000e+00> : vector<8x32xf32>
    %18 = tpu.matmul %1, %17, %cst_16 {dimension_numbers = #tpu.dot_dimension_numbers<[1], [0], [0], [1], [0, 0, 1, 1], [], []>} : vector<8x32xf32>, vector<32x32xf32>, vector<8x32xf32> -> vector<8x32xf32>
    %c2_17 = arith.constant 2 : index
    %c0_18 = arith.constant 0 : index
    %c0_19 = arith.constant 0 : index
    %19 = vector.load %arg3[%c2_17, %c0_18, %c0_19] : memref<3x1x32xf32, #tpu.memory_space<vmem>>, vector<1x1x32xf32>
    %20 = vector.shape_cast %19 : vector<1x1x32xf32> to vector<1x32xf32>
    %21 = vector.broadcast %20 : vector<1x32xf32> to vector<8x32xf32>
    %22 = arith.addf %18, %21 : vector<8x32xf32>
    %cst_20 = arith.constant dense<0.000000e+00> : vector<8x8xf32>
    %23 = tpu.matmul %8, %15, %cst_20 {dimension_numbers = #tpu.dot_dimension_numbers<[1], [1], [0], [0], [0, 0, 1, 0], [], []>} : vector<8x32xf32>, vector<8x32xf32>, vector<8x8xf32> -> vector<8x8xf32>
    %cst_21 = arith.constant dense<0xFF800000> : vector<8xf32>
    %24 = vector.multi_reduction <maximumf>, %23, %cst_21 [1] : vector<8x8xf32> to vector<8xf32>
    %25 = vector.shape_cast %24 : vector<8xf32> to vector<8x1xf32>
    %26 = vector.broadcast %25 : vector<8x1xf32> to vector<8x8xf32>
    %27 = arith.subf %23, %26 : vector<8x8xf32>
    %28 = math.exp %27 : vector<8x8xf32>
    %cst_22 = arith.constant dense<0.000000e+00> : vector<8xf32>
    %29 = vector.multi_reduction <add>, %28, %cst_22 [1] : vector<8x8xf32> to vector<8xf32>
    %30 = vector.shape_cast %29 : vector<8xf32> to vector<8x1xf32>
    %31 = vector.broadcast %30 : vector<8x1xf32> to vector<8x8xf32>
    %32 = arith.divf %28, %31 : vector<8x8xf32>
    %cst_23 = arith.constant dense<0.000000e+00> : vector<8x32xf32>
    %33 = tpu.matmul %32, %22, %cst_23 {dimension_numbers = #tpu.dot_dimension_numbers<[1], [0], [0], [1], [0, 0, 1, 1], [], []>} : vector<8x8xf32>, vector<8x32xf32>, vector<8x32xf32> -> vector<8x32xf32>
    %c0_24 = arith.constant 0 : index
    %c0_25 = arith.constant 0 : index
    %c0_26 = arith.constant 0 : index
    %34 = vector.load %arg4[%c0_24, %c0_25, %c0_26] : memref<1x8x32xf32, #tpu.memory_space<vmem>>, vector<1x8x32xf32>
    %35 = vector.shape_cast %34 : vector<1x8x32xf32> to vector<8x32xf32>
    %36 = vector.shape_cast %33 : vector<8x32xf32> to vector<1x8x32xf32>
    tpu.vector_store %arg4[%c0_24, %c0_25, %c0_26], %36 {strides = array<i32>} : memref<1x8x32xf32, #tpu.memory_space<vmem>>, vector<1x8x32xf32>,
    return
  }
  func.func @transform_0(%arg0: i32) -> (i32, i32, i32) {
    %c0_i32 = arith.constant 0 : i32
    %c0_i32_0 = arith.constant 0 : i32
    %c0_i32_1 = arith.constant 0 : i32
    return %arg0, %c0_i32, %c0_i32_0 : i32, i32, i32
  }
  func.func @transform_1(%arg0: i32) -> (i32, i32, i32) {
    %c0_i32 = arith.constant 0 : i32
    %c0_i32_0 = arith.constant 0 : i32
    %c0_i32_1 = arith.constant 0 : i32
    %c0_i32_2 = arith.constant 0 : i32
    return %c0_i32, %c0_i32_0, %c0_i32_1 : i32, i32, i32
  }
  func.func @transform_2(%arg0: i32) -> (i32, i32, i32) {
    %c0_i32 = arith.constant 0 : i32
    %c0_i32_0 = arith.constant 0 : i32
    %c0_i32_1 = arith.constant 0 : i32
    %c0_i32_2 = arith.constant 0 : i32
    return %c0_i32, %c0_i32_0, %c0_i32_1 : i32, i32, i32
  }
  func.func @transform_3(%arg0: i32) -> (i32, i32, i32) {
    %c0_i32 = arith.constant 0 : i32
    %c0_i32_0 = arith.constant 0 : i32
    %c0_i32_1 = arith.constant 0 : i32
    return %arg0, %c0_i32, %c0_i32_0 : i32, i32, i32
  }
}

</mosaic_0001>

<llo_original>
// kernel: attention_forward.1
$region0: #{attention_forward.1}
  #allocation0 [shape = 'u32[]', space=smem, size = 0x4, offset = 0x4, fixed_abs, tag = 'smem constant byte address 0x4 - core index']
  #allocation1 [shape = 'u32[144,128]{1,0:T(1,128)}', space=vmem, size = 0x12000, scoped, tag = 'internal scratch']
  %s0 = inlined_call_operand.hbm [shape: f32[2,8,32], index: 0, kind: input, shape index: {}]
  %s1 = inlined_call_operand.hbm [shape: f32[3,32,32], index: 1, kind: input, shape index: {}]
  %s2 = inlined_call_operand.vmem [shape: f32[3,1,32], index: 2, kind: input, shape index: {}]
  %s3 = inlined_call_operand.hbm [shape: f32[2,8,32], index: 3, kind: output, shape index: {}]
  %s4 = sld [smem:[#allocation0]]
  $region53: #{attention_forward.1} parent=0
    _
  %s6 = ssub.s32 1, %s4
  %s7 = scalar_select 0, %s6, %s4
  $region1: #{attention_forward.1} parent=0
    #allocation2 [shape = 'u8[8192]{0}', space=vmem, size = 0x2000, scoped, tag = 'input window, operand 0']
    #allocation3 [shape = 's32[2]{0}', space=sflag, size = 0x8, scoped, tag = 'scoped memory for attention_forward.1']
    #allocation4 [shape = 's32[2]{0}', space=sflag, size = 0x8, scoped, tag = 'scoped memory for attention_forward.1']
    #allocation5 [shape = 'u8[49152]{0}', space=vmem, size = 0xc000, scoped, tag = 'input window, operand 1, single buffered']
    #allocation6 [shape = 's32[1]{0}', space=sflag, size = 0x4, scoped, tag = 'scoped memory for attention_forward.1']
    #allocation7 [shape = 'u8[8192]{0}', space=vmem, size = 0x2000, scoped, tag = 'output window, operand 0']
    %8 = vsyncpa [#allocation3], 0
    %s9 = scalar_lea.sflag [#allocation3], 1
    %10 = vsyncpa %s9, 0
    %11 = vsyncpa [#allocation6], 0
    %12 = vsyncpa [#allocation4], 0
    %s13 = scalar_lea.sflag [#allocation4], 1
    %14 = vsyncpa %s13, 0
    loop: start=0, step=1, limit=4
    $region2: #{attention_forward.1} parent=1 // loop_pre_header
      _
    $region3: #{attention_forward.1} parent=1 // loop_header
      %s16 = sphi 0, %s20
      %p17 = scmp.ge.s32.totalorder %s16, 4
      %s26 = sphi 0, %s28
      %s29 = sphi 0, %s26
      %s30 = sphi 0, %s29
      %s46 = sphi 0, %s30
      %s50 = sphi 0, %s50
      %s52 = sphi 0, %s50
      %s53 = sphi 0, %s52
      %s67 = sphi 0, %s53
      %s71 = sphi 0, %s71
      %s73 = sphi 0, %s71
      %s74 = sphi 0, %s73
      %s88 = sphi 0, %s74
      %s94 = sphi 0, %s96
      %s97 = sphi 0, %s94
      %s98 = sphi 0, %s97
      %s114 = sphi 0, %s98
    $region4: #{attention_forward.1} parent=1 // loop_header_branch
      %19 = sbr.rel (%p17) target = $region8
    $region5: #{attention_forward.1} parent=1 // loop_body
      %s21 = ssub.s32 %s16, 1
      %s22 = ssub.s32 %s16, 2
      %s23 = sadd.s32 %s16, 1
      %s24 = ssub.s32 %s16, %s23
      %p25 = scmp.eq.s32.totalorder %s24, 0
      %s27 = sadd.s32 %s26, 1
      %s28 = scalar_select %p25, %s26, %s27
      %p31 = pneg %p25
      %p32 = scmp.eq.s32.totalorder %s16, 1
      %p33 = por %p31, %p32
      %p34 = scmp.ne.s32.totalorder %s26, %s29
      %p35 = scmp.eq.s32.totalorder %s16, 0
      %p36 = por %p34, %p35
      %p37 = scmp.ne.s32.totalorder %s26, %s29
      %p38 = scmp.eq.s32.totalorder %s21, 1
      %p39 = por %p37, %p38
      %p40 = scmp.ne.s32.totalorder %s29, %s30
      %p41 = scmp.eq.s32.totalorder %s21, 0
      %p42 = por %p40, %p41
      %p43 = scmp.ne.s32.totalorder %s29, %s30
      %p44 = scmp.eq.s32.totalorder %s22, 1
      %p45 = por %p43, %p44
      %p47 = scmp.ne.s32.totalorder %s30, %s46
      %p48 = scmp.eq.s32.totalorder %s22, 0
      %p49 = por %p47, %p48
      %s51 = sadd.s32 %s50, 1
      %p54 = scmp.eq.s32.totalorder %s16, 1
      %p55 = scmp.ne.s32.totalorder %s50, %s52
      %p56 = scmp.eq.s32.totalorder %s16, 0
      %p57 = por %p55, %p56
      %p58 = scmp.ne.s32.totalorder %s50, %s52
      %p59 = scmp.eq.s32.totalorder %s21, 1
      %p60 = por %p58, %p59
      %p61 = scmp.ne.s32.totalorder %s52, %s53
      %p62 = scmp.eq.s32.totalorder %s21, 0
      %p63 = por %p61, %p62
      %p64 = scmp.ne.s32.totalorder %s52, %s53
      %p65 = scmp.eq.s32.totalorder %s22, 1
      %p66 = por %p64, %p65
      %p68 = scmp.ne.s32.totalorder %s53, %s67
      %p69 = scmp.eq.s32.totalorder %s22, 0
      %p70 = por %p68, %p69
      %s72 = sadd.s32 %s71, 1
      %p75 = scmp.eq.s32.totalorder %s16, 1
      %p76 = scmp.ne.s32.totalorder %s71, %s73
      %p77 = scmp.eq.s32.totalorder %s16, 0
      %p78 = por %p76, %p77
      %p79 = scmp.ne.s32.totalorder %s71, %s73
      %p80 = scmp.eq.s32.totalorder %s21, 1
      %p81 = por %p79, %p80
      %p82 = scmp.ne.s32.totalorder %s73, %s74
      %p83 = scmp.eq.s32.totalorder %s21, 0
      %p84 = por %p82, %p83
      %p85 = scmp.ne.s32.totalorder %s73, %s74
      %p86 = scmp.eq.s32.totalorder %s22, 1
      %p87 = por %p85, %p86
      %p89 = scmp.ne.s32.totalorder %s74, %s88
      %p90 = scmp.eq.s32.totalorder %s22, 0
      %p91 = por %p89, %p90
      %s92 = ssub.s32 %s16, %s23
      %p93 = scmp.eq.s32.totalorder %s92, 0
      %s95 = sadd.s32 %s94, 1
      %s96 = scalar_select %p93, %s94, %s95
      %p99 = pneg %p93
      %p100 = scmp.eq.s32.totalorder %s16, 1
      %p101 = por %p99, %p100
      %p102 = scmp.ne.s32.totalorder %s94, %s97
      %p103 = scmp.eq.s32.totalorder %s16, 0
      %p104 = por %p102, %p103
      %p105 = scmp.ne.s32.totalorder %s94, %s97
      %p106 = scmp.eq.s32.totalorder %s21, 1
      %p107 = por %p105, %p106
      %p108 = scmp.ne.s32.totalorder %s97, %s98
      %p109 = scmp.eq.s32.totalorder %s21, 0
      %p110 = por %p108, %p109
      %p111 = scmp.ne.s32.totalorder %s97, %s98
      %p112 = scmp.eq.s32.totalorder %s22, 1
      %p113 = por %p111, %p112
      %p115 = scmp.ne.s32.totalorder %s98, %s114
      %p116 = scmp.eq.s32.totalorder %s22, 0
      %p117 = por %p115, %p116
      %p118 = scmp.le.s32.totalorder 1, %s16
      %p119 = scmp.lt.s32.totalorder %s16, 3
      %p120 = pnand %p118, %p119
      %p121 = pneg %p120
      // Predicated region
      $region9: #{attention_forward.1} parent=5 // pred_check
        _
      $region10: #{attention_forward.1} parent=5 // pred_check_branch
        %123 = sbr.rel (%p120) target = $region12
      $region11: #{attention_forward.1} parent=5 // pred_region
        %s124 = ssub.s32 %s16, 1
        // Predicated region
        $region13: #{attention_forward.1} parent=11 // pred_check
          %p125 = pneg %p63
        $region14: #{attention_forward.1} parent=11 // pred_check_branch
          %127 = sbr.rel (%p125) target = $region16
        $region15: #{attention_forward.1} parent=11 // pred_region
          %s129 = ssub.s32 1536, 1536
          %130 = vsyncadd [#allocation6], %s129
          %s131 = sshll.u32 [#allocation5], 4
          %s132 = int_to_ptr.vmem [resolvable:$true] %s131
          %137 = dma.hbm_to_vmem [thread:$0]  %s1, 1536, %s132, [#allocation6], 128, 128, 8
        $region16: #{attention_forward.1} parent=11 // pred_fallthru
          _
        // Predicated region
        $region17: #{attention_forward.1} parent=11 // pred_check
          %p138 = pneg %p84
        $region18: #{attention_forward.1} parent=11 // pred_check_branch
          %140 = sbr.rel (%p138) target = $region20
        $region19: #{attention_forward.1} parent=11 // pred_region
          _
        $region20: #{attention_forward.1} parent=11 // pred_fallthru
          _
      $region12: #{attention_forward.1} parent=5 // pred_fallthru
        _
      %p141 = scmp.lt.s32.totalorder %s16, 2
      // Predicated region
      $region21: #{attention_forward.1} parent=5 // pred_check
        %p142 = pneg %p141
      $region22: #{attention_forward.1} parent=5 // pred_check_branch
        %144 = sbr.rel (%p142) target = $region24
      $region23: #{attention_forward.1} parent=5 // pred_region
        // Predicated region
        $region25: #{attention_forward.1} parent=23 // pred_check
          %p145 = pneg %p36
        $region26: #{attention_forward.1} parent=23 // pred_check_branch
          %147 = sbr.rel (%p145) target = $region28
        $region27: #{attention_forward.1} parent=23 // pred_region
          %s148 = sand.u32 %s26, 1
          %s149 = scalar_lea.sflag [#allocation3], %s148
          %s150 = sand.u32 %s26, 1
          %s151 = smul.addr %s150, 8
          %s152 = scalar_lea.vmem [#allocation2], %s151
          %s154 = ssub.s32 128, 128
          %155 = vsyncadd %s149, %s154
          %s156 = smul.addr %s16, 128
          %s157 = scalar_lea.hbm %s0, %s156
          %s159 = sshll.u32 %s152, 4
          %s160 = int_to_ptr.vmem [resolvable:$true] %s159
          %162 = dma.hbm_to_vmem [thread:$0]  %s157, 128, %s160, %s149
        $region28: #{attention_forward.1} parent=23 // pred_fallthru
          _
      $region24: #{attention_forward.1} parent=5 // pred_fallthru
        _
      %p163 = scmp.le.s32.totalorder 1, %s16
      %p164 = scmp.lt.s32.totalorder %s16, 3
      %p165 = pnand %p163, %p164
      %p166 = pneg %p165
      // Predicated region
      $region29: #{attention_forward.1} parent=5 // pred_check
        _
      $region30: #{attention_forward.1} parent=5 // pred_check_branch
        %168 = sbr.rel (%p165) target = $region32
      $region31: #{attention_forward.1} parent=5 // pred_region
        %s169 = ssub.s32 %s16, 1
        %s170 = sand.u32 %s29, 1
        %s171 = scalar_lea.sflag [#allocation3], %s170
        %s172 = sand.u32 %s29, 1
        %s173 = smul.addr %s172, 8
        %s174 = scalar_lea.vmem [#allocation2], %s173
        // Predicated region
        $region33: #{attention_forward.1} parent=31 // pred_check
          %p175 = pneg %p42
        $region34: #{attention_forward.1} parent=31 // pred_check_branch
          %177 = sbr.rel (%p175) target = $region36
        $region35: #{attention_forward.1} parent=31 // pred_region
          %178 = dma.done %s171, 128
        $region36: #{attention_forward.1} parent=31 // pred_fallthru
          _
        // Predicated region
        $region37: #{attention_forward.1} parent=31 // pred_check
          %p179 = pneg %p63
        $region38: #{attention_forward.1} parent=31 // pred_check_branch
          %181 = sbr.rel (%p179) target = $region40
        $region39: #{attention_forward.1} parent=31 // pred_region
          %182 = dma.done [#allocation6], 1536
        $region40: #{attention_forward.1} parent=31 // pred_fallthru
          _
        %s183 = sand.u32 %s29, 1
        %s184 = scalar_lea.sflag [#allocation3], %s183
        %s185 = sand.u32 %s29, 1
        %s186 = smul.addr %s185, 8
        %s187 = scalar_lea.vmem [#allocation2], %s186
        %p188 = pneg %p42
        %p189 = pneg %p39
        %p190 = pneg %p63
        %p191 = pneg %p60
        %p192 = pneg %p84
        %p193 = pneg %p81
        %p194 = pneg %p110
        %p195 = pneg %p107
        %s196 = sand.u32 %s97, 1
        %s197 = scalar_lea.sflag [#allocation4], %s196
        %s198 = sand.u32 %s97, 1
        %s199 = smul.addr %s198, 8
        %s200 = scalar_lea.vmem [#allocation7], %s199
        %v201 = vld [vmem:[%s174] sm:$0xff]
        %v202 = vld [vmem:[#allocation5] sm:$0xff]
        %v203 = vld [vmem:[#allocation5 + $0x8] sm:$0xff]
        %v204 = vld [vmem:[#allocation5 + $0x10] sm:$0xff]
        %v205 = vld [vmem:[#allocation5 + $0x18] sm:$0xff]
        %v206 = vld [vmem:[%s2] sm:$0x1]
        %v208 = vlaneseq
        %v209 = vshrl.u32 %v208, 7
        %v210 = vsub.s32 0, %v209
        %v211 = vrot.slane %v206, %v210
        %vm213 = vcmask 261120
        %v215 = vsel %vm213, %v201, 0
        %217 = vmatprep.subr.mxu0 0.0
        %218 = vmatpush1.msra.mxu0 %v202
        %219 = vmatprep.subr.mxu0 0.0
        %220 = vmatpush1.msra.mxu0 %v203
        %221 = vmatprep.subr.mxu0 0.0
        %222 = vmatpush1.msra.mxu0 %v204
        %223 = vmatprep.subr.mxu0 0.0
        %224 = vmatpush1.msra.mxu0 %v205
        %225 = vmatprep.subr.mxu0 0.0
        %226 = vmatpush1.msra.mxu0 0.0
        %227 = vmatprep.subr.mxu0 0.0
        %228 = vmatpush1.msra.mxu0 0.0
        %229 = vmatprep.subr.mxu0 0.0
        %230 = vmatpush1.msra.mxu0 0.0
        %231 = vmatprep.subr.mxu0 0.0
        %232 = vmatpush1.msra.mxu0 0.0
        %233 = vmatprep.subr.mxu0 0.0
        %234 = vmatpush1.msra.mxu0 0.0
        %235 = vmatprep.subr.mxu0 0.0
        %236 = vmatpush1.msra.mxu0 0.0
        %237 = vmatprep.subr.mxu0 0.0
        %238 = vmatpush1.msra.mxu0 0.0
        %239 = vmatprep.subr.mxu0 0.0
        %240 = vmatpush1.msra.mxu0 0.0
        %241 = vmatprep.subr.mxu0 0.0
        %242 = vmatpush1.msra.mxu0 0.0
        %243 = vmatprep.subr.mxu0 0.0
        %244 = vmatpush1.msra.mxu0 0.0
        %245 = vmatprep.subr.mxu0 0.0
        %246 = vmatpush1.msra.mxu0 0.0
        %247 = vmatprep.subr.mxu0 0.0
        %248 = vmatpush1.msra.mxu0 0.0
        %249 = vmatprep.subr.mxu0 0.0
        %250 = vmatpush1.msra.mxu0 0.0
        %251 = vmatprep.subr.mxu0 0.0
        %252 = vmatpush1.msra.mxu0 0.0
        %253 = vmatprep.subr.mxu0 0.0
        %254 = vmatpush1.msra.mxu0 0.0
        %255 = vmatprep.subr.mxu0 0.0
        %256 = vmatpush1.msra.mxu0 0.0
        %257 = vmatprep.subr.mxu0 0.0
        %258 = vmatpush1.msra.mxu0 0.0
        %259 = vmatprep.subr.mxu0 0.0
        %260 = vmatpush1.msra.mxu0 0.0
        %261 = vmatprep.subr.mxu0 0.0
        %262 = vmatpush1.msra.mxu0 0.0
        %263 = vmatprep.subr.mxu0 0.0
        %264 = vmatpush1.msra.mxu0 0.0
        %265 = vmatprep.subr.mxu0 0.0
        %266 = vmatpush1.msra.mxu0 0.0
        %267 = vmatprep.subr.mxu0 0.0
        %268 = vmatpush1.msra.mxu0 0.0
        %269 = vmatprep.subr.mxu0 0.0
        %270 = vmatpush1.msra.mxu0 0.0
        %271 = vmatprep.subr.mxu0 0.0
        %272 = vmatpush1.msra.mxu0 0.0
        %273 = vmatprep.subr.mxu0 0.0
        %274 = vmatpush1.msra.mxu0 0.0
        %275 = vmatprep.subr.mxu0 0.0
        %276 = vmatpush1.msra.mxu0 0.0
        %277 = vmatprep.subr.mxu0 0.0
        %278 = vmatpush1.msra.mxu0 0.0
        %279 = vmatprep.subr.mxu0 0.0
        %280 = vmatpush1.msra.mxu0 0.0
        %281 = vmatprep.mubr.f32.mxu0 0.0
        %282 = vmatmul.mubr.f32.gmra.mrb[0].mxu0 %v215
        %v283 = vpop.f32.mrb[0].mxu0
        %v284 = vadd.f32 %v211, %v283
        %v285 = vpop.f32.mrb[0].mxu0
        %286 = vdwg.mxu0
        %s287 = scalar_lea.vmem [#allocation5], 32
        %v288 = vld [vmem:[%s287] sm:$0xff]
        %v289 = vld [vmem:[%s287 + $0x8] sm:$0xff]
        %v290 = vld [vmem:[%s287 + $0x10] sm:$0xff]
        %v291 = vld [vmem:[%s287 + $0x18] sm:$0xff]
        %s292 = scalar_lea.vmem %s2, 1
        %v293 = vld [vmem:[%s292] sm:$0x1]
        %v295 = vlaneseq
        %v296 = vshrl.u32 %v295, 7
        %v297 = vsub.s32 0, %v296
        %v298 = vrot.slane %v293, %v297
        %300 = vmatprep.subr.mxu0 0.0
        %301 = vmatpush1.msra.mxu0 %v288
        %302 = vmatprep.subr.mxu0 0.0
        %303 = vmatpush1.msra.mxu0 %v289
        %304 = vmatprep.subr.mxu0 0.0
        %305 = vmatpush1.msra.mxu0 %v290
        %306 = vmatprep.subr.mxu0 0.0
        %307 = vmatpush1.msra.mxu0 %v291
        %308 = vmatprep.subr.mxu0 0.0
        %309 = vmatpush1.msra.mxu0 0.0
        %310 = vmatprep.subr.mxu0 0.0
        %311 = vmatpush1.msra.mxu0 0.0
        %312 = vmatprep.subr.mxu0 0.0
        %313 = vmatpush1.msra.mxu0 0.0
        %314 = vmatprep.subr.mxu0 0.0
        %315 = vmatpush1.msra.mxu0 0.0
        %316 = vmatprep.subr.mxu0 0.0
        %317 = vmatpush1.msra.mxu0 0.0
        %318 = vmatprep.subr.mxu0 0.0
        %319 = vmatpush1.msra.mxu0 0.0
        %320 = vmatprep.subr.mxu0 0.0
        %321 = vmatpush1.msra.mxu0 0.0
        %322 = vmatprep.subr.mxu0 0.0
        %323 = vmatpush1.msra.mxu0 0.0
        %324 = vmatprep.subr.mxu0 0.0
        %325 = vmatpush1.msra.mxu0 0.0
        %326 = vmatprep.subr.mxu0 0.0
        %327 = vmatpush1.msra.mxu0 0.0
        %328 = vmatprep.subr.mxu0 0.0
        %329 = vmatpush1.msra.mxu0 0.0
        %330 = vmatprep.subr.mxu0 0.0
        %331 = vmatpush1.msra.mxu0 0.0
        %332 = vmatprep.subr.mxu0 0.0
        %333 = vmatpush1.msra.mxu0 0.0
        %334 = vmatprep.subr.mxu0 0.0
        %335 = vmatpush1.msra.mxu0 0.0
        %336 = vmatprep.subr.mxu0 0.0
        %337 = vmatpush1.msra.mxu0 0.0
        %338 = vmatprep.subr.mxu0 0.0
        %339 = vmatpush1.msra.mxu0 0.0
        %340 = vmatprep.subr.mxu0 0.0
        %341 = vmatpush1.msra.mxu0 0.0
        %342 = vmatprep.subr.mxu0 0.0
        %343 = vmatpush1.msra.mxu0 0.0
        %344 = vmatprep.subr.mxu0 0.0
        %345 = vmatpush1.msra.mxu0 0.0
        %346 = vmatprep.subr.mxu0 0.0
        %347 = vmatpush1.msra.mxu0 0.0
        %348 = vmatprep.subr.mxu0 0.0
        %349 = vmatpush1.msra.mxu0 0.0
        %350 = vmatprep.subr.mxu0 0.0
        %351 = vmatpush1.msra.mxu0 0.0
        %352 = vmatprep.subr.mxu0 0.0
        %353 = vmatpush1.msra.mxu0 0.0
        %354 = vmatprep.subr.mxu0 0.0
        %355 = vmatpush1.msra.mxu0 0.0
        %356 = vmatprep.subr.mxu0 0.0
        %357 = vmatpush1.msra.mxu0 0.0
        %358 = vmatprep.subr.mxu0 0.0
        %359 = vmatpush1.msra.mxu0 0.0
        %360 = vmatprep.subr.mxu0 0.0
        %361 = vmatpush1.msra.mxu0 0.0
        %362 = vmatprep.subr.mxu0 0.0
        %363 = vmatpush1.msra.mxu0 0.0
        %364 = vmatprep.mubr.f32.mxu0 0.0
        %365 = vmatmul.mubr.f32.gmra.mrb[0].mxu0 %v215
        %v366 = vpop.f32.mrb[0].mxu0
        %v367 = vadd.f32 %v298, %v366
        %v368 = vpop.f32.mrb[0].mxu0
        %369 = vdwg.mxu0
        %s370 = scalar_lea.vmem [#allocation5], 64
        %v371 = vld [vmem:[%s370] sm:$0xff]
        %v372 = vld [vmem:[%s370 + $0x8] sm:$0xff]
        %v373 = vld [vmem:[%s370 + $0x10] sm:$0xff]
        %v374 = vld [vmem:[%s370 + $0x18] sm:$0xff]
        %s375 = scalar_lea.vmem %s2, 2
        %v376 = vld [vmem:[%s375] sm:$0x1]
        %v378 = vlaneseq
        %v379 = vshrl.u32 %v378, 7
        %v380 = vsub.s32 0, %v379
        %v381 = vrot.slane %v376, %v380
        %383 = vmatprep.subr.mxu0 0.0
        %384 = vmatpush1.msra.mxu0 %v371
        %385 = vmatprep.subr.mxu0 0.0
        %386 = vmatpush1.msra.mxu0 %v372
        %387 = vmatprep.subr.mxu0 0.0
        %388 = vmatpush1.msra.mxu0 %v373
        %389 = vmatprep.subr.mxu0 0.0
        %390 = vmatpush1.msra.mxu0 %v374
        %391 = vmatprep.subr.mxu0 0.0
        %392 = vmatpush1.msra.mxu0 0.0
        %393 = vmatprep.subr.mxu0 0.0
        %394 = vmatpush1.msra.mxu0 0.0
        %395 = vmatprep.subr.mxu0 0.0
        %396 = vmatpush1.msra.mxu0 0.0
        %397 = vmatprep.subr.mxu0 0.0
        %398 = vmatpush1.msra.mxu0 0.0
        %399 = vmatprep.subr.mxu0 0.0
        %400 = vmatpush1.msra.mxu0 0.0
        %401 = vmatprep.subr.mxu0 0.0
        %402 = vmatpush1.msra.mxu0 0.0
        %403 = vmatprep.subr.mxu0 0.0
        %404 = vmatpush1.msra.mxu0 0.0
        %405 = vmatprep.subr.mxu0 0.0
        %406 = vmatpush1.msra.mxu0 0.0
        %407 = vmatprep.subr.mxu0 0.0
        %408 = vmatpush1.msra.mxu0 0.0
        %409 = vmatprep.subr.mxu0 0.0
        %410 = vmatpush1.msra.mxu0 0.0
        %411 = vmatprep.subr.mxu0 0.0
        %412 = vmatpush1.msra.mxu0 0.0
        %413 = vmatprep.subr.mxu0 0.0
        %414 = vmatpush1.msra.mxu0 0.0
        %415 = vmatprep.subr.mxu0 0.0
        %416 = vmatpush1.msra.mxu0 0.0
        %417 = vmatprep.subr.mxu0 0.0
        %418 = vmatpush1.msra.mxu0 0.0
        %419 = vmatprep.subr.mxu0 0.0
        %420 = vmatpush1.msra.mxu0 0.0
        %421 = vmatprep.subr.mxu0 0.0
        %422 = vmatpush1.msra.mxu0 0.0
        %423 = vmatprep.subr.mxu0 0.0
        %424 = vmatpush1.msra.mxu0 0.0
        %425 = vmatprep.subr.mxu0 0.0
        %426 = vmatpush1.msra.mxu0 0.0
        %427 = vmatprep.subr.mxu0 0.0
        %428 = vmatpush1.msra.mxu0 0.0
        %429 = vmatprep.subr.mxu0 0.0
        %430 = vmatpush1.msra.mxu0 0.0
        %431 = vmatprep.subr.mxu0 0.0
        %432 = vmatpush1.msra.mxu0 0.0
        %433 = vmatprep.subr.mxu0 0.0
        %434 = vmatpush1.msra.mxu0 0.0
        %435 = vmatprep.subr.mxu0 0.0
        %436 = vmatpush1.msra.mxu0 0.0
        %437 = vmatprep.subr.mxu0 0.0
        %438 = vmatpush1.msra.mxu0 0.0
        %439 = vmatprep.subr.mxu0 0.0
        %440 = vmatpush1.msra.mxu0 0.0
        %441 = vmatprep.subr.mxu0 0.0
        %442 = vmatpush1.msra.mxu0 0.0
        %443 = vmatprep.subr.mxu0 0.0
        %444 = vmatpush1.msra.mxu0 0.0
        %445 = vmatprep.subr.mxu0 0.0
        %446 = vmatpush1.msra.mxu0 0.0
        %447 = vmatprep.mubr.f32.mxu0 0.0
        %448 = vmatmul.mubr.f32.gmra.mrb[0].mxu0 %v215
        %v449 = vpop.f32.mrb[0].mxu0
        %v450 = vadd.f32 %v381, %v449
        %v451 = vpop.f32.mrb[0].mxu0
        %452 = vdwg.mxu0
        %v454 = vsel %vm213, %v284, 0
        %v457 = vsel %vm213, %v367, 0
        %459 = vmatprep.subr.mxu0 0.0
        %460 = vmatpush1.xpose.msra.mxu0 %v457
        %461 = vmatprep.subr.mxu0 0.0
        %462 = vmatpush1.xpose.msra.mxu0 0.0
        %463 = vmatprep.subr.mxu0 0.0
        %464 = vmatpush1.xpose.msra.mxu0 0.0
        %465 = vmatprep.subr.mxu0 0.0
        %466 = vmatpush1.xpose.msra.mxu0 0.0
        %467 = vmatprep.subr.mxu0 0.0
        %468 = vmatpush1.xpose.msra.mxu0 0.0
        %469 = vmatprep.subr.mxu0 0.0
        %470 = vmatpush1.xpose.msra.mxu0 0.0
        %471 = vmatprep.subr.mxu0 0.0
        %472 = vmatpush1.xpose.msra.mxu0 0.0
        %473 = vmatprep.subr.mxu0 0.0
        %474 = vmatpush1.xpose.msra.mxu0 0.0
        %475 = vmatprep.subr.mxu0 0.0
        %476 = vmatpush1.xpose.msra.mxu0 0.0
        %477 = vmatprep.subr.mxu0 0.0
        %478 = vmatpush1.xpose.msra.mxu0 0.0
        %479 = vmatprep.subr.mxu0 0.0
        %480 = vmatpush1.xpose.msra.mxu0 0.0
        %481 = vmatprep.subr.mxu0 0.0
        %482 = vmatpush1.xpose.msra.mxu0 0.0
        %483 = vmatprep.subr.mxu0 0.0
        %484 = vmatpush1.xpose.msra.mxu0 0.0
        %485 = vmatprep.subr.mxu0 0.0
        %486 = vmatpush1.xpose.msra.mxu0 0.0
        %487 = vmatprep.subr.mxu0 0.0
        %488 = vmatpush1.xpose.msra.mxu0 0.0
        %489 = vmatprep.subr.mxu0 0.0
        %490 = vmatpush1.xpose.msra.mxu0 0.0
        %491 = vmatprep.subr.mxu0 0.0
        %492 = vmatpush1.xpose.msra.mxu0 0.0
        %493 = vmatprep.subr.mxu0 0.0
        %494 = vmatpush1.xpose.msra.mxu0 0.0
        %495 = vmatprep.subr.mxu0 0.0
        %496 = vmatpush1.xpose.msra.mxu0 0.0
        %497 = vmatprep.subr.mxu0 0.0
        %498 = vmatpush1.xpose.msra.mxu0 0.0
        %499 = vmatprep.subr.mxu0 0.0
        %500 = vmatpush1.xpose.msra.mxu0 0.0
        %501 = vmatprep.subr.mxu0 0.0
        %502 = vmatpush1.xpose.msra.mxu0 0.0
        %503 = vmatprep.subr.mxu0 0.0
        %504 = vmatpush1.xpose.msra.mxu0 0.0
        %505 = vmatprep.subr.mxu0 0.0
        %506 = vmatpush1.xpose.msra.mxu0 0.0
        %507 = vmatprep.subr.mxu0 0.0
        %508 = vmatpush1.xpose.msra.mxu0 0.0
        %509 = vmatprep.subr.mxu0 0.0
        %510 = vmatpush1.xpose.msra.mxu0 0.0
        %511 = vmatprep.subr.mxu0 0.0
        %512 = vmatpush1.xpose.msra.mxu0 0.0
        %513 = vmatprep.subr.mxu0 0.0
        %514 = vmatpush1.xpose.msra.mxu0 0.0
        %515 = vmatprep.subr.mxu0 0.0
        %516 = vmatpush1.xpose.msra.mxu0 0.0
        %517 = vmatprep.subr.mxu0 0.0
        %518 = vmatpush1.xpose.msra.mxu0 0.0
        %519 = vmatprep.subr.mxu0 0.0
        %520 = vmatpush1.xpose.msra.mxu0 0.0
        %521 = vmatprep.subr.mxu0 0.0
        %522 = vmatpush1.xpose.msra.mxu0 0.0
        %523 = vmatprep.mubr.f32.mxu0 0.0
        %524 = vmatmul.mubr.f32.gmra.mrb[0].mxu0 %v454
        %v525 = vpop.f32.mrb[0].mxu0
        %v526 = vadd.f32 0.0, %v525
        %v527 = vpop.f32.mrb[0].mxu0
        %528 = vdwg.mxu0
        %vm529 = vcmask 64512
        %v530 = vsel %vm529, %v526, -inf
        %531 = vmax.xlane.f32.xlu0 %v530
        %v532 = vpop.xlane.xlu0 %531
        %v533 = vsub.f32 %v526, %v532
        %v534 = vmul.f32 %v533, 1.442695
        %v535 = vpow.pop %v534
        %v536 = vsel %vm529, %v535, 0.0
        %537 = vadd.xlane.f32.xlu0 %v536
        %v538 = vpop.xlane.xlu0 %537
        %v539 = vrcp.pop %v538
        %v540 = vmul.f32 %v535, %v539
        %v542 = vsel %vm529, %v540, 0
        %544 = vmatprep.subr.mxu0 0.0
        %545 = vmatpush1.msra.mxu0 %v450
        %546 = vmatprep.subr.mxu0 0.0
        %547 = vmatpush1.msra.mxu0 0.0
        %548 = vmatprep.subr.mxu0 0.0
        %549 = vmatpush1.msra.mxu0 0.0
        %550 = vmatprep.subr.mxu0 0.0
        %551 = vmatpush1.msra.mxu0 0.0
        %552 = vmatprep.subr.mxu0 0.0
        %553 = vmatpush1.msra.mxu0 0.0
        %554 = vmatprep.subr.mxu0 0.0
        %555 = vmatpush1.msra.mxu0 0.0
        %556 = vmatprep.subr.mxu0 0.0
        %557 = vmatpush1.msra.mxu0 0.0
        %558 = vmatprep.subr.mxu0 0.0
        %559 = vmatpush1.msra.mxu0 0.0
        %560 = vmatprep.subr.mxu0 0.0
        %561 = vmatpush1.msra.mxu0 0.0
        %562 = vmatprep.subr.mxu0 0.0
        %563 = vmatpush1.msra.mxu0 0.0
        %564 = vmatprep.subr.mxu0 0.0
        %565 = vmatpush1.msra.mxu0 0.0
        %566 = vmatprep.subr.mxu0 0.0
        %567 = vmatpush1.msra.mxu0 0.0
        %568 = vmatprep.subr.mxu0 0.0
        %569 = vmatpush1.msra.mxu0 0.0
        %570 = vmatprep.subr.mxu0 0.0
        %571 = vmatpush1.msra.mxu0 0.0
        %572 = vmatprep.subr.mxu0 0.0
        %573 = vmatpush1.msra.mxu0 0.0
        %574 = vmatprep.subr.mxu0 0.0
        %575 = vmatpush1.msra.mxu0 0.0
        %576 = vmatprep.subr.mxu0 0.0
        %577 = vmatpush1.msra.mxu0 0.0
        %578 = vmatprep.subr.mxu0 0.0
        %579 = vmatpush1.msra.mxu0 0.0
        %580 = vmatprep.subr.mxu0 0.0
        %581 = vmatpush1.msra.mxu0 0.0
        %582 = vmatprep.subr.mxu0 0.0
        %583 = vmatpush1.msra.mxu0 0.0
        %584 = vmatprep.subr.mxu0 0.0
        %585 = vmatpush1.msra.mxu0 0.0
        %586 = vmatprep.subr.mxu0 0.0
        %587 = vmatpush1.msra.mxu0 0.0
        %588 = vmatprep.subr.mxu0 0.0
        %589 = vmatpush1.msra.mxu0 0.0
        %590 = vmatprep.subr.mxu0 0.0
        %591 = vmatpush1.msra.mxu0 0.0
        %592 = vmatprep.subr.mxu0 0.0
        %593 = vmatpush1.msra.mxu0 0.0
        %594 = vmatprep.subr.mxu0 0.0
        %595 = vmatpush1.msra.mxu0 0.0
        %596 = vmatprep.subr.mxu0 0.0
        %597 = vmatpush1.msra.mxu0 0.0
        %598 = vmatprep.subr.mxu0 0.0
        %599 = vmatpush1.msra.mxu0 0.0
        %600 = vmatprep.subr.mxu0 0.0
        %601 = vmatpush1.msra.mxu0 0.0
        %602 = vmatprep.subr.mxu0 0.0
        %603 = vmatpush1.msra.mxu0 0.0
        %604 = vmatprep.subr.mxu0 0.0
        %605 = vmatpush1.msra.mxu0 0.0
        %606 = vmatprep.subr.mxu0 0.0
        %607 = vmatpush1.msra.mxu0 0.0
        %608 = vmatprep.mubr.f32.mxu0 0.0
        %609 = vmatmul.mubr.f32.gmra.mrb[0].mxu0 %v542
        %v610 = vpop.f32.mrb[0].mxu0
        %v611 = vadd.f32 0.0, %v610
        %v612 = vpop.f32.mrb[0].mxu0
        %613 = vdwg.mxu0
        %614 = vst.msk [vmem:[%s200] sm:$0xff] %vm213, %v611
        %s615 = sand.u32 %s97, 1
        %s616 = scalar_lea.sflag [#allocation4], %s615
        %s617 = sand.u32 %s97, 1
        %s618 = smul.addr %s617, 8
        %s619 = scalar_lea.vmem [#allocation7], %s618
        // Predicated region
        $region41: #{attention_forward.1} parent=31 // pred_check
          %p620 = pneg %p107
        $region42: #{attention_forward.1} parent=31 // pred_check_branch
          %622 = sbr.rel (%p620) target = $region44
        $region43: #{attention_forward.1} parent=31 // pred_region
          %s624 = ssub.s32 128, 128
          %625 = vsyncadd %s616, %s624
          %s626 = smul.addr %s21, 128
          %s627 = scalar_lea.hbm %s3, %s626
          %s629 = sshll.u32 %s619, 4
          %s630 = int_to_ptr.vmem [resolvable:$true] %s629
          %632 = dma.vmem_to_hbm [thread:$0]  %s630, 128, %s627, %s616
        $region44: #{attention_forward.1} parent=31 // pred_fallthru
          _
      $region32: #{attention_forward.1} parent=5 // pred_fallthru
        _
      %p633 = scmp.le.s32.totalorder 2, %s16
      // Predicated region
      $region45: #{attention_forward.1} parent=5 // pred_check
        %p634 = pneg %p633
      $region46: #{attention_forward.1} parent=5 // pred_check_branch
        %636 = sbr.rel (%p634) target = $region48
      $region47: #{attention_forward.1} parent=5 // pred_region
        %s637 = ssub.s32 %s16, 2
        // Predicated region
        $region49: #{attention_forward.1} parent=47 // pred_check
          %p638 = pneg %p113
        $region50: #{attention_forward.1} parent=47 // pred_check_branch
          %640 = sbr.rel (%p638) target = $region52
        $region51: #{attention_forward.1} parent=47 // pred_region
          %s641 = sand.u32 %s98, 1
          %s642 = scalar_lea.sflag [#allocation4], %s641
          %s643 = sand.u32 %s98, 1
          %s644 = smul.addr %s643, 8
          %s645 = scalar_lea.vmem [#allocation7], %s644
          %646 = dma.done %s642, 128
        $region52: #{attention_forward.1} parent=47 // pred_fallthru
          _
      $region48: #{attention_forward.1} parent=5 // pred_fallthru
        _
    $region6: #{attention_forward.1} parent=1 // loop_footer
      %s20 = sadd.s32 1, %s16
    $region7: #{attention_forward.1} parent=1 // loop_footer_branch
      %15 = sbr.rel target = $region3
    $region8: #{attention_forward.1} parent=1 // loop_exit
      _
    %647 = vsyncpa [#allocation3], 1
    %s648 = scalar_lea.sflag [#allocation3], 1
    %649 = vsyncpa %s648, 1
    %650 = vsyncpa [#allocation6], 1
    %651 = vsyncpa [#allocation4], 1
    %s652 = scalar_lea.sflag [#allocation4], 1
    %653 = vsyncpa %s652, 1

</llo_original>
